<compile_context>
chip_gen: v7x
topology: tpu7x:2x2x1
jax: 0.10.0
libtpu: 0.0.40
codegen_flags: <defaults>
</compile_context>

<pallas_src>
import functools
import math

import jax
import jax.numpy as jnp
from jax.experimental import pallas as pl
from jax.experimental.pallas import tpu as pltpu


def _round_up(x: int, m: int) -> int:
    return ((x + m - 1) // m) * m


def generate_logspace_timeperiods(num: int, t_min: float, t_max: float) -> jnp.ndarray:
    """JAX equivalent of the torch helper (deterministic, no params)."""
    if not 0 < t_min < t_max:
        raise ValueError(
            f"Invalid t_min ({t_min}) and t_max ({t_max}). They should follow 0 < t_min < t_max."
        )
    exponents = jnp.linspace(0.0, 1.0, num, dtype=jnp.float32)
    log_min = jnp.log(jnp.float32(t_min))
    log_max = jnp.log(jnp.float32(t_max))
    return jnp.exp(log_min + exponents * (log_max - log_min))


def _sinusoid_kernel(ts_ref, omega_sel_ref, sin_mask_ref, out_ref, *, k: int):
    # ts_ref:        [R, k]       f32  (k timestamps folded per output row)
    # omega_sel_ref: [k, k*dim]   f32  resident (zero-masked omega per chunk)
    # sin_mask_ref:  [1, k*dim]   f32  resident (1.0 = sin lane, 0.0 = cos lane)
    # out_ref:       [R, k*dim]   out dtype
    #
    # Lane-dense angle expansion on the VPU: only one omega_sel row is nonzero
    # per lane, so angles == ts * omega exactly (the other terms add 0.0).
    angles = ts_ref[:, 0:1] * omega_sel_ref[0:1, :]
    for j in range(1, k):  # static unroll, k <= 64 (typically <= 8)
        angles = angles + ts_ref[:, j:j + 1] * omega_sel_ref[j:j + 1, :]

    # One full-width sin + one full-width cos, exact 0/1-mask blend, single
    # unmasked full-width store.
    m = sin_mask_ref[...]
    out = jnp.sin(angles) * m + jnp.cos(angles) * (1.0 - m)
    out_ref[...] = out.astype(out_ref.dtype)


class SinusoidalTimeEmbedding:
    """Pallas-backed sinusoidal time embedding (forward-only)."""

    def __init__(self, dim: int, t_min: float, t_max: float, out_dtype=jnp.float32):
        if dim % 2 != 0:
            raise ValueError("`dim` must be a multiple of 2")
        self.dim = dim
        self.h = dim // 2
        self.out_dtype = jnp.dtype(out_dtype)

        periods = generate_logspace_timeperiods(self.h, t_min, t_max)
        self.omega = (2.0 * math.pi / periods).astype(jnp.float32)  # [dim // 2]

        # Fold k timestamps per output row so k*dim is a multiple of 128
        # (lane-dense compute + unmasked writeback).  Cap the fold at 512
        # lanes; otherwise fall back to k = 1 (valid but lane-sparse).
        lcm = dim * 128 // math.gcd(dim, 128)
        self.k = (lcm // dim) if lcm <= 512 else 1
        self.row_width = self.k * dim

        # Resident constants: zero-masked omega rows and the sin/cos lane mask.
        omega_full = jnp.concatenate([self.omega, self.omega])              # [dim]
        self.omega_sel = jnp.kron(
            jnp.eye(self.k, dtype=jnp.float32), omega_full.reshape(1, dim)
        )                                                                    # [k, k*dim]
        mask = jnp.concatenate(
            [jnp.ones((self.h,), jnp.float32), jnp.zeros((dim - self.h,), jnp.float32)]
        )
        self.sin_mask = jnp.tile(mask, self.k).reshape(1, self.row_width)    # [1, k*dim]

    def __call__(self, timestamps) -> jnp.ndarray:
        dim, k, row_width = self.dim, self.k, self.row_width
        timestamps = jnp.asarray(timestamps)
        orig_shape = timestamps.shape
        n = int(math.prod(orig_shape))  # () -> 1

        if n == 0:
            return jnp.zeros((*orig_shape, dim), dtype=self.out_dtype)

        ts_flat = timestamps.astype(jnp.float32).reshape(n)
        n_k = _round_up(n, k)
        if n_k != n:
            ts_flat = jnp.pad(ts_flat, (0, n_k - n))  # <= k-1 padded elements
        rows = n_k // k
        ts_2d = ts_flat.reshape(rows, k)
        out_itemsize = self.out_dtype.itemsize

        # ---- generation-aware tile sizing -------------------------------
        try:
            info = pltpu.get_tpu_info()
            vmem_cap = int(getattr(info, "vmem_capacity_bytes", 0)) or (64 << 20)
        except Exception:
            vmem_cap = 64 << 20
        vmem_cap = max(vmem_cap, 64 << 20)
        # ~8 MiB output blocks on v5e/v6e (128 MiB VMEM), ~4 MiB on v7x (64 MiB).
        budget = (8 << 20) if vmem_cap >= (100 << 20) else (4 << 20)

        # 32-row granularity keeps the block sublane-valid for f32/bf16/int8.
        tile_rows = max(32, (budget // max(row_width * out_itemsize, 1)) // 32 * 32)
        if rows > 4 * 32:  # keep >= ~4 grid steps so v7x's 2 TCs both get work
            tile_rows = min(tile_rows, max(32, _round_up(pl.cdiv(rows, 4), 32)))
        tile_rows = min(tile_rows, _round_up(rows, 32))

        def vmem_needed(tr: int) -> int:
            out_blk = tr * row_width * out_itemsize          # double-buffered output
            ts_blk = tr * 128 * 4                            # (tr, k) f32 lane-pads to 128
            temps = 3 * tr * row_width * 4                   # angles / sin / cos f32 temps
            resident = 2 * (_round_up(k, 8) + 8) * _round_up(row_width, 128) * 4
            return 2 * out_blk + 2 * ts_blk + temps + resident

        while vmem_needed(tile_rows) > int(0.7 * vmem_cap) and tile_rows > 32:
            tile_rows = max(32, ((tile_rows // 2) // 32) * 32)

        grid = (pl.cdiv(rows, tile_rows),)
        vmem_limit = max(32 << 20, vmem_needed(tile_rows) + (8 << 20))
        vmem_limit = int(min(vmem_limit, vmem_cap - (1 << 20)))

        kernel = functools.partial(_sinusoid_kernel, k=k)
        cost = pl.CostEstimate(
            flops=2 * n_k * dim,
            transcendentals=2 * n_k * dim,
            bytes_accessed=n_k * 4 + n_k * dim * out_itemsize + int(self.omega_sel.size) * 4,
        )

        out = pl.pallas_call(
            kernel,
            out_shape=jax.ShapeDtypeStruct((rows, row_width), self.out_dtype),
            grid=grid,
            in_specs=[
                pl.BlockSpec((tile_rows, k), lambda i: (i, 0)),
                pl.BlockSpec((k, row_width), lambda i: (0, 0)),    # resident
                pl.BlockSpec((1, row_width), lambda i: (0, 0)),    # resident
            ],
            out_specs=pl.BlockSpec((tile_rows, row_width), lambda i: (i, 0)),
            compiler_params=pltpu.CompilerParams(
                dimension_semantics=("parallel",),
                vmem_limit_bytes=vmem_limit,
            ),
            cost_estimate=cost,
        )(ts_2d, self.omega_sel, self.sin_mask)

        out = out.reshape(n_k, dim)  # contiguous -> bitcast reshape
        if n_k != n:
            # Single small crop only when n % k != 0 (at most k-1 extra rows).
            out = out[:n]
        return out.reshape(*orig_shape, dim)


def _reference(timestamps: jnp.ndarray, omega: jnp.ndarray) -> jnp.ndarray:
    angles = timestamps.astype(jnp.float32)[..., None] * omega
    return jnp.concatenate((jnp.sin(angles), jnp.cos(angles)), axis=-1)


if __name__ == "__main__":
    key = jax.random.PRNGKey(0)
    t_min, t_max = 0.1, 100.0
    batch, seq = 2, 8

    # Case 1: small dim (folded k=4, lane-dense path), dim=32.
    dim = 32
    ts = jax.random.uniform(key, (batch, seq), dtype=jnp.float32, minval=0.0, maxval=10.0)
    emb = SinusoidalTimeEmbedding(dim=dim, t_min=t_min, t_max=t_max)
    out = jax.block_until_ready(emb(ts))
    ref = _reference(ts, emb.omega)
    assert out.shape == (batch, seq, dim), out.shape
    err1 = float(jnp.max(jnp.abs(out - ref)))
    assert err1 < 1e-3, err1

    # Case 2: large dim (k=1, already lane-dense), dim=256.
    dim2 = 256
    emb2 = SinusoidalTimeEmbedding(dim=dim2, t_min=t_min, t_max=t_max)
    out2 = jax.block_until_ready(emb2(ts))
    ref2 = _reference(ts, emb2.omega)
    assert out2.shape == (batch, seq, dim2), out2.shape
    err2 = float(jnp.max(jnp.abs(out2 - ref2)))
    assert err2 < 1e-3, err2

    # Case 3: ragged 1-D length 5 (exercises k-padding + ragged grid block).
    ts3 = jax.random.uniform(jax.random.PRNGKey(1), (5,), dtype=jnp.float32, minval=0.0, maxval=10.0)
    out3 = jax.block_until_ready(emb(ts3))
    ref3 = _reference(ts3, emb.omega)
    assert out3.shape == (5, dim), out3.shape
    err3 = float(jnp.max(jnp.abs(out3 - ref3)))
    assert err3 < 1e-3, err3

    # Case 4: bf16 output (halves writeback bytes on HBM-bound v5e/v6e).
    emb_bf16 = SinusoidalTimeEmbedding(dim=dim, t_min=t_min, t_max=t_max, out_dtype=jnp.bfloat16)
    out4 = jax.block_until_ready(emb_bf16(ts))
    assert out4.dtype == jnp.bfloat16 and out4.shape == (batch, seq, dim)
    err4 = float(jnp.max(jnp.abs(out4.astype(jnp.float32) - ref)))
    assert err4 < 2e-2, err4

    print("KERNEL_OK")
</pallas_src>

<mosaic_0001>
module attributes {stable_mosaic.version = 11 : i64} {
  func.func @_sinusoid_kernel(%arg0: i32, %arg1: memref<32x4xf32, #tpu.memory_space<vmem>>, %arg2: memref<4x128xf32, #tpu.memory_space<vmem>>, %arg3: memref<1x128xf32, #tpu.memory_space<vmem>>, %arg4: memref<32x128xf32, #tpu.memory_space<vmem>>) attributes {dimension_semantics = [#tpu.dimension_semantics<parallel>], iteration_bounds = array<i64: 1>, scalar_prefetch = 0 : i64, scratch_operands = 0 : i64, tpu.core_type = #tpu.core_type<tc>, window_params = [{transform_indices = @transform_0, window_bounds = array<i64: 32, 4>}, {pipeline_mode = #tpu.pipeline_mode<synchronous>, transform_indices = @transform_1, window_bounds = array<i64: 4, 128>}, {pipeline_mode = #tpu.pipeline_mode<synchronous>, transform_indices = @transform_2, window_bounds = array<i64: 1, 128>}, {transform_indices = @transform_3, window_bounds = array<i64: 32, 128>}]} {
    %c0 = arith.constant 0 : index
    %c0_0 = arith.constant 0 : index
    %0 = vector.load %arg1[%c0, %c0_0] : memref<32x4xf32, #tpu.memory_space<vmem>>, vector<32x1xf32>
    %c0_1 = arith.constant 0 : index
    %c0_2 = arith.constant 0 : index
    %1 = vector.load %arg2[%c0_1, %c0_2] : memref<4x128xf32, #tpu.memory_space<vmem>>, vector<1x128xf32>
    %2 = vector.broadcast %0 : vector<32x1xf32> to vector<32x128xf32>
    %3 = vector.broadcast %1 : vector<1x128xf32> to vector<32x128xf32>
    %4 = arith.mulf %2, %3 : vector<32x128xf32>
    %c0_3 = arith.constant 0 : index
    %c1 = arith.constant 1 : index
    %5 = vector.load %arg1[%c0_3, %c1] : memref<32x4xf32, #tpu.memory_space<vmem>>, vector<32x1xf32>
    %c1_4 = arith.constant 1 : index
    %c0_5 = arith.constant 0 : index
    %6 = vector.load %arg2[%c1_4, %c0_5] : memref<4x128xf32, #tpu.memory_space<vmem>>, vector<1x128xf32>
    %7 = vector.broadcast %5 : vector<32x1xf32> to vector<32x128xf32>
    %8 = vector.broadcast %6 : vector<1x128xf32> to vector<32x128xf32>
    %9 = arith.mulf %7, %8 : vector<32x128xf32>
    %10 = arith.addf %4, %9 : vector<32x128xf32>
    %c0_6 = arith.constant 0 : index
    %c2 = arith.constant 2 : index
    %11 = vector.load %arg1[%c0_6, %c2] : memref<32x4xf32, #tpu.memory_space<vmem>>, vector<32x1xf32>
    %c2_7 = arith.constant 2 : index
    %c0_8 = arith.constant 0 : index
    %12 = vector.load %arg2[%c2_7, %c0_8] : memref<4x128xf32, #tpu.memory_space<vmem>>, vector<1x128xf32>
    %13 = vector.broadcast %11 : vector<32x1xf32> to vector<32x128xf32>
    %14 = vector.broadcast %12 : vector<1x128xf32> to vector<32x128xf32>
    %15 = arith.mulf %13, %14 : vector<32x128xf32>
    %16 = arith.addf %10, %15 : vector<32x128xf32>
    %c0_9 = arith.constant 0 : index
    %c3 = arith.constant 3 : index
    %17 = vector.load %arg1[%c0_9, %c3] : memref<32x4xf32, #tpu.memory_space<vmem>>, vector<32x1xf32>
    %c3_10 = arith.constant 3 : index
    %c0_11 = arith.constant 0 : index
    %18 = vector.load %arg2[%c3_10, %c0_11] : memref<4x128xf32, #tpu.memory_space<vmem>>, vector<1x128xf32>
    %19 = vector.broadcast %17 : vector<32x1xf32> to vector<32x128xf32>
    %20 = vector.broadcast %18 : vector<1x128xf32> to vector<32x128xf32>
    %21 = arith.mulf %19, %20 : vector<32x128xf32>
    %22 = arith.addf %16, %21 : vector<32x128xf32>
    %c0_12 = arith.constant 0 : index
    %c0_13 = arith.constant 0 : index
    %23 = vector.load %arg3[%c0_12, %c0_13] : memref<1x128xf32, #tpu.memory_space<vmem>>, vector<1x128xf32>
    %24 = math.sin %22 : vector<32x128xf32>
    %25 = vector.broadcast %23 : vector<1x128xf32> to vector<32x128xf32>
    %26 = arith.mulf %24, %25 : vector<32x128xf32>
    %27 = math.cos %22 : vector<32x128xf32>
    %cst = arith.constant 1.000000e+00 : f32
    %28 = vector.broadcast %cst : f32 to vector<1x128xf32>
    %29 = arith.subf %28, %23 : vector<1x128xf32>
    %30 = vector.broadcast %29 : vector<1x128xf32> to vector<32x128xf32>
    %31 = arith.mulf %27, %30 : vector<32x128xf32>
    %32 = arith.addf %26, %31 : vector<32x128xf32>
    %c0_14 = arith.constant 0 : index
    %c0_15 = arith.constant 0 : index
    %33 = vector.load %arg4[%c0_14, %c0_15] : memref<32x128xf32, #tpu.memory_space<vmem>>, vector<32x128xf32>
    tpu.vector_store %arg4[%c0_14, %c0_15], %32 {strides = array<i32>} : memref<32x128xf32, #tpu.memory_space<vmem>>, vector<32x128xf32>,
    return
  }
  func.func @transform_0(%arg0: i32) -> (i32, i32) {
    %c0_i32 = arith.constant 0 : i32
    %c0_i32_0 = arith.constant 0 : i32
    return %arg0, %c0_i32 : i32, i32
  }
  func.func @transform_1(%arg0: i32) -> (i32, i32) {
    %c0_i32 = arith.constant 0 : i32
    %c0_i32_0 = arith.constant 0 : i32
    %c0_i32_1 = arith.constant 0 : i32
    return %c0_i32, %c0_i32_0 : i32, i32
  }
  func.func @transform_2(%arg0: i32) -> (i32, i32) {
    %c0_i32 = arith.constant 0 : i32
    %c0_i32_0 = arith.constant 0 : i32
    %c0_i32_1 = arith.constant 0 : i32
    return %c0_i32, %c0_i32_0 : i32, i32
  }
  func.func @transform_3(%arg0: i32) -> (i32, i32) {
    %c0_i32 = arith.constant 0 : i32
    %c0_i32_0 = arith.constant 0 : i32
    return %arg0, %c0_i32 : i32, i32
  }
}

</mosaic_0001>

<llo_original>
// kernel: tpu_custom_call.1
$region0: #{tpu_custom_call.1}
  #allocation0 [shape = 'u32[]', space=smem, size = 0x4, offset = 0x4, fixed_abs, tag = 'smem constant byte address 0x4 - core index']
  #allocation1 [shape = 'u32[144,128]{1,0:T(1,128)}', space=vmem, size = 0x12000, scoped, tag = 'internal scratch']
  %s0 = inlined_call_operand.hbm [shape: f32[4,4], index: 0, kind: input, shape index: {}]
  %s1 = inlined_call_operand.hbm [shape: f32[4,128], index: 1, kind: input, shape index: {}]
  %s2 = inlined_call_operand.vmem [shape: f32[1,128], index: 2, kind: input, shape index: {}]
  %s3 = inlined_call_operand.hbm [shape: f32[4,128], index: 3, kind: output, shape index: {}]
  %s4 = sld [smem:[#allocation0]]
  $region30: #{tpu_custom_call.1} parent=0
    _
  %s6 = ssub.s32 1, %s4
  %s7 = scalar_select 0, %s6, %s4
  $region1: #{tpu_custom_call.1} parent=0
    #allocation2 [shape = 'u8[16384]{0}', space=vmem, size = 0x4000, scoped, tag = 'input window, operand 0, single buffered']
    #allocation3 [shape = 's32[1]{0}', space=sflag, size = 0x4, scoped, tag = 'scoped memory for tpu_custom_call.1']
    #allocation4 [shape = 's32[1]{0}', space=sflag, size = 0x4, scoped, tag = 'scoped memory for tpu_custom_call.1']
    #allocation5 [shape = 'u8[2048]{0}', space=vmem, size = 0x800, scoped, tag = 'input window, operand 1, single buffered']
    #allocation6 [shape = 's32[1]{0}', space=sflag, size = 0x4, scoped, tag = 'scoped memory for tpu_custom_call.1']
    #allocation7 [shape = 'u8[16384]{0}', space=vmem, size = 0x4000, scoped, tag = 'output window, operand 0, single buffered']
    %8 = vsyncpa [#allocation3], 0
    %9 = vsyncpa [#allocation6], 0
    %10 = vsyncpa [#allocation4], 0
    // Predicated region
    $region2: #{tpu_custom_call.1} parent=1 // pred_check
      _
    $region3: #{tpu_custom_call.1} parent=1 // pred_check_branch
      %12 = sbr.rel (0) target = $region5
    $region4: #{tpu_custom_call.1} parent=1 // pred_region
      %s14 = ssub.s32 512, 64
      %15 = vsyncadd [#allocation3], %s14
      %s16 = sshll.u32 [#allocation2], 4
      %s17 = int_to_ptr.vmem [resolvable:$true] %s16
      %22 = dma.hbm_to_vmem [thread:$0]  %s0, 64, %s17, [#allocation3], 64, 64, 4
    $region5: #{tpu_custom_call.1} parent=1 // pred_fallthru
      _
    // Predicated region
    $region6: #{tpu_custom_call.1} parent=1 // pred_check
      _
    $region7: #{tpu_custom_call.1} parent=1 // pred_check_branch
      %24 = sbr.rel (0) target = $region9
    $region8: #{tpu_custom_call.1} parent=1 // pred_region
      %s26 = ssub.s32 64, 64
      %27 = vsyncadd [#allocation6], %s26
      %s29 = sshll.u32 [#allocation5], 4
      %s30 = int_to_ptr.vmem [resolvable:$true] %s29
      %32 = dma.hbm_to_vmem [thread:$0]  %s1, 64, %s30, [#allocation6]
    $region9: #{tpu_custom_call.1} parent=1 // pred_fallthru
      _
    // Predicated region
    $region10: #{tpu_custom_call.1} parent=1 // pred_check
      _
    $region11: #{tpu_custom_call.1} parent=1 // pred_check_branch
      %34 = sbr.rel (0) target = $region13
    $region12: #{tpu_custom_call.1} parent=1 // pred_region
      _
    $region13: #{tpu_custom_call.1} parent=1 // pred_fallthru
      _
    // Predicated region
    $region14: #{tpu_custom_call.1} parent=1 // pred_check
      _
    $region15: #{tpu_custom_call.1} parent=1 // pred_check_branch
      %36 = sbr.rel (0) target = $region17
    $region16: #{tpu_custom_call.1} parent=1 // pred_region
      %37 = dma.done [#allocation3], 512
    $region17: #{tpu_custom_call.1} parent=1 // pred_fallthru
      _
    // Predicated region
    $region18: #{tpu_custom_call.1} parent=1 // pred_check
      _
    $region19: #{tpu_custom_call.1} parent=1 // pred_check_branch
      %39 = sbr.rel (0) target = $region21
    $region20: #{tpu_custom_call.1} parent=1 // pred_region
      %40 = dma.done [#allocation6], 64
    $region21: #{tpu_custom_call.1} parent=1 // pred_fallthru
      _
    %v41 = vld [vmem:[#allocation2] sm:$0xff]
    %v42 = vld [vmem:[#allocation2 + $0x8] sm:$0xff]
    %v43 = vld [vmem:[#allocation2 + $0x10] sm:$0xff]
    %v44 = vld [vmem:[#allocation2 + $0x18] sm:$0xff]
    %v45 = vld [vmem:[#allocation5] sm:$0x1]
    %47 = vset.pattern.permute.xlu0 0
    %48 = vperm.xlu0 %47, %v41
    %v49 = vpop.permute.xlu0 %48
    %52 = vset.pattern.permute.xlu0 0
    %53 = vperm.xlu0 %52, %v42
    %v54 = vpop.permute.xlu0 %53
    %57 = vset.pattern.permute.xlu0 0
    %58 = vperm.xlu0 %57, %v43
    %v59 = vpop.permute.xlu0 %58
    %62 = vset.pattern.permute.xlu0 0
    %63 = vperm.xlu0 %62, %v44
    %v64 = vpop.permute.xlu0 %63
    %v66 = vlaneseq
    %v67 = vshrl.u32 %v66, 7
    %v68 = vsub.s32 0, %v67
    %v69 = vrot.slane %v45, %v68
    %v70 = vmul.f32 %v49, %v69
    %v71 = vmul.f32 %v54, %v69
    %v72 = vmul.f32 %v59, %v69
    %v73 = vmul.f32 %v64, %v69
    %v74 = vld [vmem:[#allocation5 + $0x1] sm:$0x1]
    %75 = vset.pattern.permute.xlu0 1
    %76 = vperm.xlu0 %75, %v41
    %v77 = vpop.permute.xlu0 %76
    %79 = vset.pattern.permute.xlu0 1
    %80 = vperm.xlu0 %79, %v42
    %v81 = vpop.permute.xlu0 %80
    %83 = vset.pattern.permute.xlu0 1
    %84 = vperm.xlu0 %83, %v43
    %v85 = vpop.permute.xlu0 %84
    %87 = vset.pattern.permute.xlu0 1
    %88 = vperm.xlu0 %87, %v44
    %v89 = vpop.permute.xlu0 %88
    %v91 = vlaneseq
    %v92 = vshrl.u32 %v91, 7
    %v93 = vsub.s32 0, %v92
    %v94 = vrot.slane %v74, %v93
    %v95 = vmul.f32 %v77, %v94
    %v96 = vmul.f32 %v81, %v94
    %v97 = vmul.f32 %v85, %v94
    %v98 = vmul.f32 %v89, %v94
    %v99 = vadd.f32 %v70, %v95
    %v100 = vadd.f32 %v71, %v96
    %v101 = vadd.f32 %v72, %v97
    %v102 = vadd.f32 %v73, %v98
    %v103 = vld [vmem:[#allocation5 + $0x2] sm:$0x1]
    %104 = vset.pattern.permute.xlu0 2
    %105 = vperm.xlu0 %104, %v41
    %v106 = vpop.permute.xlu0 %105
    %108 = vset.pattern.permute.xlu0 2
    %109 = vperm.xlu0 %108, %v42
    %v110 = vpop.permute.xlu0 %109
    %112 = vset.pattern.permute.xlu0 2
    %113 = vperm.xlu0 %112, %v43
    %v114 = vpop.permute.xlu0 %113
    %116 = vset.pattern.permute.xlu0 2
    %117 = vperm.xlu0 %116, %v44
    %v118 = vpop.permute.xlu0 %117
    %v120 = vlaneseq
    %v121 = vshrl.u32 %v120, 7
    %v122 = vsub.s32 0, %v121
    %v123 = vrot.slane %v103, %v122
    %v124 = vmul.f32 %v106, %v123
    %v125 = vmul.f32 %v110, %v123
    %v126 = vmul.f32 %v114, %v123
    %v127 = vmul.f32 %v118, %v123
    %v128 = vadd.f32 %v99, %v124
    %v129 = vadd.f32 %v100, %v125
    %v130 = vadd.f32 %v101, %v126
    %v131 = vadd.f32 %v102, %v127
    %v132 = vld [vmem:[#allocation5 + $0x3] sm:$0x1]
    %133 = vset.pattern.permute.xlu0 3
    %134 = vperm.xlu0 %133, %v41
    %v135 = vpop.permute.xlu0 %134
    %137 = vset.pattern.permute.xlu0 3
    %138 = vperm.xlu0 %137, %v42
    %v139 = vpop.permute.xlu0 %138
    %141 = vset.pattern.permute.xlu0 3
    %142 = vperm.xlu0 %141, %v43
    %v143 = vpop.permute.xlu0 %142
    %145 = vset.pattern.permute.xlu0 3
    %146 = vperm.xlu0 %145, %v44
    %v147 = vpop.permute.xlu0 %146
    %v149 = vlaneseq
    %v150 = vshrl.u32 %v149, 7
    %v151 = vsub.s32 0, %v150
    %v152 = vrot.slane %v132, %v151
    %v153 = vmul.f32 %v135, %v152
    %v154 = vmul.f32 %v139, %v152
    %v155 = vmul.f32 %v143, %v152
    %v156 = vmul.f32 %v147, %v152
    %v157 = vadd.f32 %v128, %v153
    %v158 = vadd.f32 %v129, %v154
    %v159 = vadd.f32 %v130, %v155
    %v160 = vadd.f32 %v131, %v156
    %v161 = vld [vmem:[%s2] sm:$0x1]
    %v162 = vand.u32 2147483647, %v157
    %vm163 = vcmp.le.f32.partialorder %v162, 0.7853982
    %vm164 = vcmp.lt.s32.totalorder %v157, 0
    %v165 = vand.u32 %v157, 2139095040
    %v166 = vshrl.u32 %v165, 23
    %v167 = vsub.s32 %v166, 127
    %v168 = vand.u32 2147483647, %v157
    %v169 = vand.u32 %v168, 8388607
    %v170 = vor.u32 %v169, 8388608
    %v171 = vsub.s32 0, %v170
    %v172 = vadd.s32 %v167, 1
    %vm173 = vcmp.gt.s32.totalorder %v172, 0
    %v174 = vsel %vm173, %v172, 0
    %v175 = vshrl.u32 %v174, 5
    %v176 = vand.u32 %v174, 31
    %v177 = vsub.s32 32, %v176
    %v178 = vshrl.u32 683565275, %v177
    %v179 = vshll.u32 683565275, %v176
    %v180 = vshrl.u32 2475754826, %v177
    %v181 = vor.u32 %v179, %v180
    %v182 = vshll.u32 2475754826, %v176
    %v183 = vshrl.u32 2131351028, %v177
    %v184 = vor.u32 %v182, %v183
    %v185 = vshll.u32 2131351028, %v176
    %v186 = vshrl.u32 2102212464, %v177
    %v187 = vor.u32 %v185, %v186
    %v188 = vshll.u32 2102212464, %v176
    %v189 = vshrl.u32 920167782, %v177
    %v190 = vor.u32 %v188, %v189
    %v191 = vshll.u32 920167782, %v176
    %v192 = vshrl.u32 1326507024, %v177
    %v193 = vor.u32 %v191, %v192
    %vm194 = vcmp.lt.s32.totalorder %v175, 1
    %vm195 = vcmp.lt.s32.totalorder %v175, 2
    %vm196 = vcmp.lt.s32.totalorder %v175, 3
    %vm197 = vcmp.lt.s32.totalorder %v175, 4
    %v198 = vsel %vm194, %v178, %v181
    %v199 = vsel %vm197, %v187, 2102212464
    %v200 = vsel %vm196, %v184, %v199
    %v201 = vsel %vm195, %v198, %v200
    %v202 = vsel %vm194, %v181, %v184
    %v203 = vsel %vm197, %v190, 920167782
    %v204 = vsel %vm196, %v187, %v203
    %v205 = vsel %vm195, %v202, %v204
    %v206 = vsel %vm194, %v184, %v187
    %v207 = vsel %vm197, %v193, 1326507024
    %v208 = vsel %vm196, %v190, %v207
    %v209 = vsel %vm195, %v206, %v208
    %v210 = vshll.u32 %v170, 8
    %v211 = vmul.u32.u64.compose %v210, %v209
    %v212 = vextract.low.u32 %v211
    %v213 = vextract.high.u32 %v211
    %v214 = vmul.u32.u64.compose %v210, %v205
    %v215 = vextract.low.u32 %v214
    %v216 = vextract.high.u32 %v214
    %v217 = vmul.u32 %v210, %v201
    %v218 = vadd.s32 %v213, %v215
    %vm219 = vc.u32 %v213, %v215
    %v220 = vadd.s32 %v216, 1
    %v221 = vsel %vm219, %v220, %v216
    %v222 = vadd.s32 %v217, %v221
    %v223 = vadd.s32 %v222, 536870912
    %v224 = vshrl.u32 %v223, 30
    %v225 = vshll.u32 %v224, 30
    %v226 = vsub.s32 %v222, %v225
    %vm227 = vcmp.lt.s32.totalorder %v226, 0
    %v228 = vsub.s32 0, %v226
    %v229 = vsel %vm227, %v228, %v226
    %v230 = vclz %v229
    %v231 = vsub.s32 %v230, 2
    %vm232 = vcmp.gt.s32.totalorder 0, %v231
    %v233 = vsel %vm232, 0, %v231
    %v234 = vsub.s32 32, %v233
    %v235 = vshll.u32 %v226, %v233
    %v236 = vshrl.u32 %v218, %v234
    %v237 = vor.u32 %v235, %v236
    %v238 = vsub.s32 4294967266, %v233
    %v239 = vadd.s32 %v238, 127
    %v240 = vshll.u32 %v239, 23
    %v241 = vor.u32 4788187, %v240
    %v242 = vand.u32 2147483647, %v241
    %v244 = vcvt.s32.f32 %v237
    %v245 = vmul.f32 %v244, %v242
    %v246 = vxor.u32 %v245, 2147483648
    %v247 = vsel %vm164, %v246, %v245
    %v248 = vsub.s32 4, %v224
    %v249 = vsel %vm164, %v248, %v224
    %v250 = vsel %vm163, %v157, %v247
    %v251 = vsel %vm163, 0, %v249
    %v252 = vcosq.f32.pop %v250
    %v253 = vsinq.f32.pop %v250
    %vm254 = vweird.f32 %v157
    %v255 = vadd.s32 %v251, 3
    %v256 = vand.u32 %v255, 3
    %vm257 = vcmp.lt.s32.totalorder %v256, 2
    %vm258 = vcmp.eq.s32.totalorder %v256, 0
    %v259 = vxor.u32 %v253, 2147483648
    %v260 = vsel %vm258, %v252, %v259
    %vm261 = vcmp.eq.s32.totalorder %v256, 2
    %v262 = vxor.u32 %v252, 2147483648
    %v263 = vsel %vm261, %v262, %v253
    %v264 = vsel %vm257, %v260, %v263
    %v265 = vsel %vm254, nan, %v264
    %v266 = vand.u32 2147483647, %v158
    %vm267 = vcmp.le.f32.partialorder %v266, 0.7853982
    %vm268 = vcmp.lt.s32.totalorder %v158, 0
    %v269 = vand.u32 %v158, 2139095040
    %v270 = vshrl.u32 %v269, 23
    %v271 = vsub.s32 %v270, 127
    %v272 = vand.u32 2147483647, %v158
    %v273 = vand.u32 %v272, 8388607
    %v274 = vor.u32 %v273, 8388608
    %v275 = vsub.s32 0, %v274
    %v276 = vadd.s32 %v271, 1
    %vm277 = vcmp.gt.s32.totalorder %v276, 0
    %v278 = vsel %vm277, %v276, 0
    %v279 = vshrl.u32 %v278, 5
    %v280 = vand.u32 %v278, 31
    %v281 = vsub.s32 32, %v280
    %v282 = vshrl.u32 683565275, %v281
    %v283 = vshll.u32 683565275, %v280
    %v284 = vshrl.u32 2475754826, %v281
    %v285 = vor.u32 %v283, %v284
    %v286 = vshll.u32 2475754826, %v280
    %v287 = vshrl.u32 2131351028, %v281
    %v288 = vor.u32 %v286, %v287
    %v289 = vshll.u32 2131351028, %v280
    %v290 = vshrl.u32 2102212464, %v281
    %v291 = vor.u32 %v289, %v290
    %v292 = vshll.u32 2102212464, %v280
    %v293 = vshrl.u32 920167782, %v281
    %v294 = vor.u32 %v292, %v293
    %v295 = vshll.u32 920167782, %v280
    %v296 = vshrl.u32 1326507024, %v281
    %v297 = vor.u32 %v295, %v296
    %vm298 = vcmp.lt.s32.totalorder %v279, 1
    %vm299 = vcmp.lt.s32.totalorder %v279, 2
    %vm300 = vcmp.lt.s32.totalorder %v279, 3
    %vm301 = vcmp.lt.s32.totalorder %v279, 4
    %v302 = vsel %vm298, %v282, %v285
    %v303 = vsel %vm301, %v291, 2102212464
    %v304 = vsel %vm300, %v288, %v303
    %v305 = vsel %vm299, %v302, %v304
    %v306 = vsel %vm298, %v285, %v288
    %v307 = vsel %vm301, %v294, 920167782
    %v308 = vsel %vm300, %v291, %v307
    %v309 = vsel %vm299, %v306, %v308
    %v310 = vsel %vm298, %v288, %v291
    %v311 = vsel %vm301, %v297, 1326507024
    %v312 = vsel %vm300, %v294, %v311
    %v313 = vsel %vm299, %v310, %v312
    %v314 = vshll.u32 %v274, 8
    %v315 = vmul.u32.u64.compose %v314, %v313
    %v316 = vextract.low.u32 %v315
    %v317 = vextract.high.u32 %v315
    %v318 = vmul.u32.u64.compose %v314, %v309
    %v319 = vextract.low.u32 %v318
    %v320 = vextract.high.u32 %v318
    %v321 = vmul.u32 %v314, %v305
    %v322 = vadd.s32 %v317, %v319
    %vm323 = vc.u32 %v317, %v319
    %v324 = vadd.s32 %v320, 1
    %v325 = vsel %vm323, %v324, %v320
    %v326 = vadd.s32 %v321, %v325
    %v327 = vadd.s32 %v326, 536870912
    %v328 = vshrl.u32 %v327, 30
    %v329 = vshll.u32 %v328, 30
    %v330 = vsub.s32 %v326, %v329
    %vm331 = vcmp.lt.s32.totalorder %v330, 0
    %v332 = vsub.s32 0, %v330
    %v333 = vsel %vm331, %v332, %v330
    %v334 = vclz %v333
    %v335 = vsub.s32 %v334, 2
    %vm336 = vcmp.gt.s32.totalorder 0, %v335
    %v337 = vsel %vm336, 0, %v335
    %v338 = vsub.s32 32, %v337
    %v339 = vshll.u32 %v330, %v337
    %v340 = vshrl.u32 %v322, %v338
    %v341 = vor.u32 %v339, %v340
    %v342 = vsub.s32 4294967266, %v337
    %v343 = vadd.s32 %v342, 127
    %v344 = vshll.u32 %v343, 23
    %v345 = vor.u32 4788187, %v344
    %v346 = vand.u32 2147483647, %v345
    %v348 = vcvt.s32.f32 %v341
    %v349 = vmul.f32 %v348, %v346
    %v350 = vxor.u32 %v349, 2147483648
    %v351 = vsel %vm268, %v350, %v349
    %v352 = vsub.s32 4, %v328
    %v353 = vsel %vm268, %v352, %v328
    %v354 = vsel %vm267, %v158, %v351
    %v355 = vsel %vm267, 0, %v353
    %v356 = vcosq.f32.pop %v354
    %v357 = vsinq.f32.pop %v354
    %vm358 = vweird.f32 %v158
    %v359 = vadd.s32 %v355, 3
    %v360 = vand.u32 %v359, 3
    %vm361 = vcmp.lt.s32.totalorder %v360, 2
    %vm362 = vcmp.eq.s32.totalorder %v360, 0
    %v363 = vxor.u32 %v357, 2147483648
    %v364 = vsel %vm362, %v356, %v363
    %vm365 = vcmp.eq.s32.totalorder %v360, 2
    %v366 = vxor.u32 %v356, 2147483648
    %v367 = vsel %vm365, %v366, %v357
    %v368 = vsel %vm361, %v364, %v367
    %v369 = vsel %vm358, nan, %v368
    %v370 = vand.u32 2147483647, %v159
    %vm371 = vcmp.le.f32.partialorder %v370, 0.7853982
    %vm372 = vcmp.lt.s32.totalorder %v159, 0
    %v373 = vand.u32 %v159, 2139095040
    %v374 = vshrl.u32 %v373, 23
    %v375 = vsub.s32 %v374, 127
    %v376 = vand.u32 2147483647, %v159
    %v377 = vand.u32 %v376, 8388607
    %v378 = vor.u32 %v377, 8388608
    %v379 = vsub.s32 0, %v378
    %v380 = vadd.s32 %v375, 1
    %vm381 = vcmp.gt.s32.totalorder %v380, 0
    %v382 = vsel %vm381, %v380, 0
    %v383 = vshrl.u32 %v382, 5
    %v384 = vand.u32 %v382, 31
    %v385 = vsub.s32 32, %v384
    %v386 = vshrl.u32 683565275, %v385
    %v387 = vshll.u32 683565275, %v384
    %v388 = vshrl.u32 2475754826, %v385
    %v389 = vor.u32 %v387, %v388
    %v390 = vshll.u32 2475754826, %v384
    %v391 = vshrl.u32 2131351028, %v385
    %v392 = vor.u32 %v390, %v391
    %v393 = vshll.u32 2131351028, %v384
    %v394 = vshrl.u32 2102212464, %v385
    %v395 = vor.u32 %v393, %v394
    %v396 = vshll.u32 2102212464, %v384
    %v397 = vshrl.u32 920167782, %v385
    %v398 = vor.u32 %v396, %v397
    %v399 = vshll.u32 920167782, %v384
    %v400 = vshrl.u32 1326507024, %v385
    %v401 = vor.u32 %v399, %v400
    %vm402 = vcmp.lt.s32.totalorder %v383, 1
    %vm403 = vcmp.lt.s32.totalorder %v383, 2
    %vm404 = vcmp.lt.s32.totalorder %v383, 3
    %vm405 = vcmp.lt.s32.totalorder %v383, 4
    %v406 = vsel %vm402, %v386, %v389
    %v407 = vsel %vm405, %v395, 2102212464
    %v408 = vsel %vm404, %v392, %v407
    %v409 = vsel %vm403, %v406, %v408
    %v410 = vsel %vm402, %v389, %v392
    %v411 = vsel %vm405, %v398, 920167782
    %v412 = vsel %vm404, %v395, %v411
    %v413 = vsel %vm403, %v410, %v412
    %v414 = vsel %vm402, %v392, %v395
    %v415 = vsel %vm405, %v401, 1326507024
    %v416 = vsel %vm404, %v398, %v415
    %v417 = vsel %vm403, %v414, %v416
    %v418 = vshll.u32 %v378, 8
    %v419 = vmul.u32.u64.compose %v418, %v417
    %v420 = vextract.low.u32 %v419
    %v421 = vextract.high.u32 %v419
    %v422 = vmul.u32.u64.compose %v418, %v413
    %v423 = vextract.low.u32 %v422
    %v424 = vextract.high.u32 %v422
    %v425 = vmul.u32 %v418, %v409
    %v426 = vadd.s32 %v421, %v423
    %vm427 = vc.u32 %v421, %v423
    %v428 = vadd.s32 %v424, 1
    %v429 = vsel %vm427, %v428, %v424
    %v430 = vadd.s32 %v425, %v429
    %v431 = vadd.s32 %v430, 536870912
    %v432 = vshrl.u32 %v431, 30
    %v433 = vshll.u32 %v432, 30
    %v434 = vsub.s32 %v430, %v433
    %vm435 = vcmp.lt.s32.totalorder %v434, 0
    %v436 = vsub.s32 0, %v434
    %v437 = vsel %vm435, %v436, %v434
    %v438 = vclz %v437
    %v439 = vsub.s32 %v438, 2
    %vm440 = vcmp.gt.s32.totalorder 0, %v439
    %v441 = vsel %vm440, 0, %v439
    %v442 = vsub.s32 32, %v441
    %v443 = vshll.u32 %v434, %v441
    %v444 = vshrl.u32 %v426, %v442
    %v445 = vor.u32 %v443, %v444
    %v446 = vsub.s32 4294967266, %v441
    %v447 = vadd.s32 %v446, 127
    %v448 = vshll.u32 %v447, 23
    %v449 = vor.u32 4788187, %v448
    %v450 = vand.u32 2147483647, %v449
    %v452 = vcvt.s32.f32 %v445
    %v453 = vmul.f32 %v452, %v450
    %v454 = vxor.u32 %v453, 2147483648
    %v455 = vsel %vm372, %v454, %v453
    %v456 = vsub.s32 4, %v432
    %v457 = vsel %vm372, %v456, %v432
    %v458 = vsel %vm371, %v159, %v455
    %v459 = vsel %vm371, 0, %v457
    %v460 = vcosq.f32.pop %v458
    %v461 = vsinq.f32.pop %v458
    %vm462 = vweird.f32 %v159
    %v463 = vadd.s32 %v459, 3
    %v464 = vand.u32 %v463, 3
    %vm465 = vcmp.lt.s32.totalorder %v464, 2
    %vm466 = vcmp.eq.s32.totalorder %v464, 0
    %v467 = vxor.u32 %v461, 2147483648
    %v468 = vsel %vm466, %v460, %v467
    %vm469 = vcmp.eq.s32.totalorder %v464, 2
    %v470 = vxor.u32 %v460, 2147483648
    %v471 = vsel %vm469, %v470, %v461
    %v472 = vsel %vm465, %v468, %v471
    %v473 = vsel %vm462, nan, %v472
    %v474 = vand.u32 2147483647, %v160
    %vm475 = vcmp.le.f32.partialorder %v474, 0.7853982
    %vm476 = vcmp.lt.s32.totalorder %v160, 0
    %v477 = vand.u32 %v160, 2139095040
    %v478 = vshrl.u32 %v477, 23
    %v479 = vsub.s32 %v478, 127
    %v480 = vand.u32 2147483647, %v160
    %v481 = vand.u32 %v480, 8388607
    %v482 = vor.u32 %v481, 8388608
    %v483 = vsub.s32 0, %v482
    %v484 = vadd.s32 %v479, 1
    %vm485 = vcmp.gt.s32.totalorder %v484, 0
    %v486 = vsel %vm485, %v484, 0
    %v487 = vshrl.u32 %v486, 5
    %v488 = vand.u32 %v486, 31
    %v489 = vsub.s32 32, %v488
    %v490 = vshrl.u32 683565275, %v489
    %v491 = vshll.u32 683565275, %v488
    %v492 = vshrl.u32 2475754826, %v489
    %v493 = vor.u32 %v491, %v492
    %v494 = vshll.u32 2475754826, %v488
    %v495 = vshrl.u32 2131351028, %v489
    %v496 = vor.u32 %v494, %v495
    %v497 = vshll.u32 2131351028, %v488
    %v498 = vshrl.u32 2102212464, %v489
    %v499 = vor.u32 %v497, %v498
    %v500 = vshll.u32 2102212464, %v488
    %v501 = vshrl.u32 920167782, %v489
    %v502 = vor.u32 %v500, %v501
    %v503 = vshll.u32 920167782, %v488
    %v504 = vshrl.u32 1326507024, %v489
    %v505 = vor.u32 %v503, %v504
    %vm506 = vcmp.lt.s32.totalorder %v487, 1
    %vm507 = vcmp.lt.s32.totalorder %v487, 2
    %vm508 = vcmp.lt.s32.totalorder %v487, 3
    %vm509 = vcmp.lt.s32.totalorder %v487, 4
    %v510 = vsel %vm506, %v490, %v493
    %v511 = vsel %vm509, %v499, 2102212464
    %v512 = vsel %vm508, %v496, %v511
    %v513 = vsel %vm507, %v510, %v512
    %v514 = vsel %vm506, %v493, %v496
    %v515 = vsel %vm509, %v502, 920167782
    %v516 = vsel %vm508, %v499, %v515
    %v517 = vsel %vm507, %v514, %v516
    %v518 = vsel %vm506, %v496, %v499
    %v519 = vsel %vm509, %v505, 1326507024
    %v520 = vsel %vm508, %v502, %v519
    %v521 = vsel %vm507, %v518, %v520
    %v522 = vshll.u32 %v482, 8
    %v523 = vmul.u32.u64.compose %v522, %v521
    %v524 = vextract.low.u32 %v523
    %v525 = vextract.high.u32 %v523
    %v526 = vmul.u32.u64.compose %v522, %v517
    %v527 = vextract.low.u32 %v526
    %v528 = vextract.high.u32 %v526
    %v529 = vmul.u32 %v522, %v513
    %v530 = vadd.s32 %v525, %v527
    %vm531 = vc.u32 %v525, %v527
    %v532 = vadd.s32 %v528, 1
    %v533 = vsel %vm531, %v532, %v528
    %v534 = vadd.s32 %v529, %v533
    %v535 = vadd.s32 %v534, 536870912
    %v536 = vshrl.u32 %v535, 30
    %v537 = vshll.u32 %v536, 30
    %v538 = vsub.s32 %v534, %v537
    %vm539 = vcmp.lt.s32.totalorder %v538, 0
    %v540 = vsub.s32 0, %v538
    %v541 = vsel %vm539, %v540, %v538
    %v542 = vclz %v541
    %v543 = vsub.s32 %v542, 2
    %vm544 = vcmp.gt.s32.totalorder 0, %v543
    %v545 = vsel %vm544, 0, %v543
    %v546 = vsub.s32 32, %v545
    %v547 = vshll.u32 %v538, %v545
    %v548 = vshrl.u32 %v530, %v546
    %v549 = vor.u32 %v547, %v548
    %v550 = vsub.s32 4294967266, %v545
    %v551 = vadd.s32 %v550, 127
    %v552 = vshll.u32 %v551, 23
    %v553 = vor.u32 4788187, %v552
    %v554 = vand.u32 2147483647, %v553
    %v556 = vcvt.s32.f32 %v549
    %v557 = vmul.f32 %v556, %v554
    %v558 = vxor.u32 %v557, 2147483648
    %v559 = vsel %vm476, %v558, %v557
    %v560 = vsub.s32 4, %v536
    %v561 = vsel %vm476, %v560, %v536
    %v562 = vsel %vm475, %v160, %v559
    %v563 = vsel %vm475, 0, %v561
    %v564 = vcosq.f32.pop %v562
    %v565 = vsinq.f32.pop %v562
    %vm566 = vweird.f32 %v160
    %v567 = vadd.s32 %v563, 3
    %v568 = vand.u32 %v567, 3
    %vm569 = vcmp.lt.s32.totalorder %v568, 2
    %vm570 = vcmp.eq.s32.totalorder %v568, 0
    %v571 = vxor.u32 %v565, 2147483648
    %v572 = vsel %vm570, %v564, %v571
    %vm573 = vcmp.eq.s32.totalorder %v568, 2
    %v574 = vxor.u32 %v564, 2147483648
    %v575 = vsel %vm573, %v574, %v565
    %v576 = vsel %vm569, %v572, %v575
    %v577 = vsel %vm566, nan, %v576
    %v579 = vlaneseq
    %v580 = vshrl.u32 %v579, 7
    %v581 = vsub.s32 0, %v580
    %v582 = vrot.slane %v161, %v581
    %v584 = vmul.f32 %v265, %v582
    %v585 = vmul.f32 %v369, %v582
    %v586 = vmul.f32 %v473, %v582
    %v587 = vmul.f32 %v577, %v582
    %v588 = vand.u32 2147483647, %v157
    %vm589 = vcmp.le.f32.partialorder %v588, 0.7853982
    %vm590 = vcmp.lt.s32.totalorder %v157, 0
    %v591 = vand.u32 %v157, 2139095040
    %v592 = vshrl.u32 %v591, 23
    %v593 = vsub.s32 %v592, 127
    %v594 = vand.u32 2147483647, %v157
    %v595 = vand.u32 %v594, 8388607
    %v596 = vor.u32 %v595, 8388608
    %v597 = vsub.s32 0, %v596
    %v598 = vadd.s32 %v593, 1
    %vm599 = vcmp.gt.s32.totalorder %v598, 0
    %v600 = vsel %vm599, %v598, 0
    %v601 = vshrl.u32 %v600, 5
    %v602 = vand.u32 %v600, 31
    %v603 = vsub.s32 32, %v602
    %v604 = vshrl.u32 683565275, %v603
    %v605 = vshll.u32 683565275, %v602
    %v606 = vshrl.u32 2475754826, %v603
    %v607 = vor.u32 %v605, %v606
    %v608 = vshll.u32 2475754826, %v602
    %v609 = vshrl.u32 2131351028, %v603
    %v610 = vor.u32 %v608, %v609
    %v611 = vshll.u32 2131351028, %v602
    %v612 = vshrl.u32 2102212464, %v603
    %v613 = vor.u32 %v611, %v612
    %v614 = vshll.u32 2102212464, %v602
    %v615 = vshrl.u32 920167782, %v603
    %v616 = vor.u32 %v614, %v615
    %v617 = vshll.u32 920167782, %v602
    %v618 = vshrl.u32 1326507024, %v603
    %v619 = vor.u32 %v617, %v618
    %vm620 = vcmp.lt.s32.totalorder %v601, 1
    %vm621 = vcmp.lt.s32.totalorder %v601, 2
    %vm622 = vcmp.lt.s32.totalorder %v601, 3
    %vm623 = vcmp.lt.s32.totalorder %v601, 4
    %v624 = vsel %vm620, %v604, %v607
    %v625 = vsel %vm623, %v613, 2102212464
    %v626 = vsel %vm622, %v610, %v625
    %v627 = vsel %vm621, %v624, %v626
    %v628 = vsel %vm620, %v607, %v610
    %v629 = vsel %vm623, %v616, 920167782
    %v630 = vsel %vm622, %v613, %v629
    %v631 = vsel %vm621, %v628, %v630
    %v632 = vsel %vm620, %v610, %v613
    %v633 = vsel %vm623, %v619, 1326507024
    %v634 = vsel %vm622, %v616, %v633
    %v635 = vsel %vm621, %v632, %v634
    %v636 = vshll.u32 %v596, 8
    %v637 = vmul.u32.u64.compose %v636, %v635
    %v638 = vextract.low.u32 %v637
    %v639 = vextract.high.u32 %v637
    %v640 = vmul.u32.u64.compose %v636, %v631
    %v641 = vextract.low.u32 %v640
    %v642 = vextract.high.u32 %v640
    %v643 = vmul.u32 %v636, %v627
    %v644 = vadd.s32 %v639, %v641
    %vm645 = vc.u32 %v639, %v641
    %v646 = vadd.s32 %v642, 1
    %v647 = vsel %vm645, %v646, %v642
    %v648 = vadd.s32 %v643, %v647
    %v649 = vadd.s32 %v648, 536870912
    %v650 = vshrl.u32 %v649, 30
    %v651 = vshll.u32 %v650, 30
    %v652 = vsub.s32 %v648, %v651
    %vm653 = vcmp.lt.s32.totalorder %v652, 0
    %v654 = vsub.s32 0, %v652
    %v655 = vsel %vm653, %v654, %v652
    %v656 = vclz %v655
    %v657 = vsub.s32 %v656, 2
    %vm658 = vcmp.gt.s32.totalorder 0, %v657
    %v659 = vsel %vm658, 0, %v657
    %v660 = vsub.s32 32, %v659
    %v661 = vshll.u32 %v652, %v659
    %v662 = vshrl.u32 %v644, %v660
    %v663 = vor.u32 %v661, %v662
    %v664 = vsub.s32 4294967266, %v659
    %v665 = vadd.s32 %v664, 127
    %v666 = vshll.u32 %v665, 23
    %v667 = vor.u32 4788187, %v666
    %v668 = vand.u32 2147483647, %v667
    %v670 = vcvt.s32.f32 %v663
    %v671 = vmul.f32 %v670, %v668
    %v672 = vxor.u32 %v671, 2147483648
    %v673 = vsel %vm590, %v672, %v671
    %v674 = vsub.s32 4, %v650
    %v675 = vsel %vm590, %v674, %v650
    %v676 = vsel %vm589, %v157, %v673
    %v677 = vsel %vm589, 0, %v675
    %v678 = vcosq.f32.pop %v676
    %v679 = vsinq.f32.pop %v676
    %vm680 = vweird.f32 %v157
    %v681 = vand.u32 %v677, 3
    %vm682 = vcmp.lt.s32.totalorder %v681, 2
    %vm683 = vcmp.eq.s32.totalorder %v681, 0
    %v684 = vxor.u32 %v679, 2147483648
    %v685 = vsel %vm683, %v678, %v684
    %vm686 = vcmp.eq.s32.totalorder %v681, 2
    %v687 = vxor.u32 %v678, 2147483648
    %v688 = vsel %vm686, %v687, %v679
    %v689 = vsel %vm682, %v685, %v688
    %v690 = vsel %vm680, nan, %v689
    %v691 = vand.u32 2147483647, %v158
    %vm692 = vcmp.le.f32.partialorder %v691, 0.7853982
    %vm693 = vcmp.lt.s32.totalorder %v158, 0
    %v694 = vand.u32 %v158, 2139095040
    %v695 = vshrl.u32 %v694, 23
    %v696 = vsub.s32 %v695, 127
    %v697 = vand.u32 2147483647, %v158
    %v698 = vand.u32 %v697, 8388607
    %v699 = vor.u32 %v698, 8388608
    %v700 = vsub.s32 0, %v699
    %v701 = vadd.s32 %v696, 1
    %vm702 = vcmp.gt.s32.totalorder %v701, 0
    %v703 = vsel %vm702, %v701, 0
    %v704 = vshrl.u32 %v703, 5
    %v705 = vand.u32 %v703, 31
    %v706 = vsub.s32 32, %v705
    %v707 = vshrl.u32 683565275, %v706
    %v708 = vshll.u32 683565275, %v705
    %v709 = vshrl.u32 2475754826, %v706
    %v710 = vor.u32 %v708, %v709
    %v711 = vshll.u32 2475754826, %v705
    %v712 = vshrl.u32 2131351028, %v706
    %v713 = vor.u32 %v711, %v712
    %v714 = vshll.u32 2131351028, %v705
    %v715 = vshrl.u32 2102212464, %v706
    %v716 = vor.u32 %v714, %v715
    %v717 = vshll.u32 2102212464, %v705
    %v718 = vshrl.u32 920167782, %v706
    %v719 = vor.u32 %v717, %v718
    %v720 = vshll.u32 920167782, %v705
    %v721 = vshrl.u32 1326507024, %v706
    %v722 = vor.u32 %v720, %v721
    %vm723 = vcmp.lt.s32.totalorder %v704, 1
    %vm724 = vcmp.lt.s32.totalorder %v704, 2
    %vm725 = vcmp.lt.s32.totalorder %v704, 3
    %vm726 = vcmp.lt.s32.totalorder %v704, 4
    %v727 = vsel %vm723, %v707, %v710
    %v728 = vsel %vm726, %v716, 2102212464
    %v729 = vsel %vm725, %v713, %v728
    %v730 = vsel %vm724, %v727, %v729
    %v731 = vsel %vm723, %v710, %v713
    %v732 = vsel %vm726, %v719, 920167782
    %v733 = vsel %vm725, %v716, %v732
    %v734 = vsel %vm724, %v731, %v733
    %v735 = vsel %vm723, %v713, %v716
    %v736 = vsel %vm726, %v722, 1326507024
    %v737 = vsel %vm725, %v719, %v736
    %v738 = vsel %vm724, %v735, %v737
    %v739 = vshll.u32 %v699, 8
    %v740 = vmul.u32.u64.compose %v739, %v738
    %v741 = vextract.low.u32 %v740
    %v742 = vextract.high.u32 %v740
    %v743 = vmul.u32.u64.compose %v739, %v734
    %v744 = vextract.low.u32 %v743
    %v745 = vextract.high.u32 %v743
    %v746 = vmul.u32 %v739, %v730
    %v747 = vadd.s32 %v742, %v744
    %vm748 = vc.u32 %v742, %v744
    %v749 = vadd.s32 %v745, 1
    %v750 = vsel %vm748, %v749, %v745
    %v751 = vadd.s32 %v746, %v750
    %v752 = vadd.s32 %v751, 536870912
    %v753 = vshrl.u32 %v752, 30
    %v754 = vshll.u32 %v753, 30
    %v755 = vsub.s32 %v751, %v754
    %vm756 = vcmp.lt.s32.totalorder %v755, 0
    %v757 = vsub.s32 0, %v755
    %v758 = vsel %vm756, %v757, %v755
    %v759 = vclz %v758
    %v760 = vsub.s32 %v759, 2
    %vm761 = vcmp.gt.s32.totalorder 0, %v760
    %v762 = vsel %vm761, 0, %v760
    %v763 = vsub.s32 32, %v762
    %v764 = vshll.u32 %v755, %v762
    %v765 = vshrl.u32 %v747, %v763
    %v766 = vor.u32 %v764, %v765
    %v767 = vsub.s32 4294967266, %v762
    %v768 = vadd.s32 %v767, 127
    %v769 = vshll.u32 %v768, 23
    %v770 = vor.u32 4788187, %v769
    %v771 = vand.u32 2147483647, %v770
    %v773 = vcvt.s32.f32 %v766
    %v774 = vmul.f32 %v773, %v771
    %v775 = vxor.u32 %v774, 2147483648
    %v776 = vsel %vm693, %v775, %v774
    %v777 = vsub.s32 4, %v753
    %v778 = vsel %vm693, %v777, %v753
    %v779 = vsel %vm692, %v158, %v776
    %v780 = vsel %vm692, 0, %v778
    %v781 = vcosq.f32.pop %v779
    %v782 = vsinq.f32.pop %v779
    %vm783 = vweird.f32 %v158
    %v784 = vand.u32 %v780, 3
    %vm785 = vcmp.lt.s32.totalorder %v784, 2
    %vm786 = vcmp.eq.s32.totalorder %v784, 0
    %v787 = vxor.u32 %v782, 2147483648
    %v788 = vsel %vm786, %v781, %v787
    %vm789 = vcmp.eq.s32.totalorder %v784, 2
    %v790 = vxor.u32 %v781, 2147483648
    %v791 = vsel %vm789, %v790, %v782
    %v792 = vsel %vm785, %v788, %v791
    %v793 = vsel %vm783, nan, %v792
    %v794 = vand.u32 2147483647, %v159
    %vm795 = vcmp.le.f32.partialorder %v794, 0.7853982
    %vm796 = vcmp.lt.s32.totalorder %v159, 0
    %v797 = vand.u32 %v159, 2139095040
    %v798 = vshrl.u32 %v797, 23
    %v799 = vsub.s32 %v798, 127
    %v800 = vand.u32 2147483647, %v159
    %v801 = vand.u32 %v800, 8388607
    %v802 = vor.u32 %v801, 8388608
    %v803 = vsub.s32 0, %v802
    %v804 = vadd.s32 %v799, 1
    %vm805 = vcmp.gt.s32.totalorder %v804, 0
    %v806 = vsel %vm805, %v804, 0
    %v807 = vshrl.u32 %v806, 5
    %v808 = vand.u32 %v806, 31
    %v809 = vsub.s32 32, %v808
    %v810 = vshrl.u32 683565275, %v809
    %v811 = vshll.u32 683565275, %v808
    %v812 = vshrl.u32 2475754826, %v809
    %v813 = vor.u32 %v811, %v812
    %v814 = vshll.u32 2475754826, %v808
    %v815 = vshrl.u32 2131351028, %v809
    %v816 = vor.u32 %v814, %v815
    %v817 = vshll.u32 2131351028, %v808
    %v818 = vshrl.u32 2102212464, %v809
    %v819 = vor.u32 %v817, %v818
    %v820 = vshll.u32 2102212464, %v808
    %v821 = vshrl.u32 920167782, %v809
    %v822 = vor.u32 %v820, %v821
    %v823 = vshll.u32 920167782, %v808
    %v824 = vshrl.u32 1326507024, %v809
    %v825 = vor.u32 %v823, %v824
    %vm826 = vcmp.lt.s32.totalorder %v807, 1
    %vm827 = vcmp.lt.s32.totalorder %v807, 2
    %vm828 = vcmp.lt.s32.totalorder %v807, 3
    %vm829 = vcmp.lt.s32.totalorder %v807, 4
    %v830 = vsel %vm826, %v810, %v813
    %v831 = vsel %vm829, %v819, 2102212464
    %v832 = vsel %vm828, %v816, %v831
    %v833 = vsel %vm827, %v830, %v832
    %v834 = vsel %vm826, %v813, %v816
    %v835 = vsel %vm829, %v822, 920167782
    %v836 = vsel %vm828, %v819, %v835
    %v837 = vsel %vm827, %v834, %v836
    %v838 = vsel %vm826, %v816, %v819
    %v839 = vsel %vm829, %v825, 1326507024
    %v840 = vsel %vm828, %v822, %v839
    %v841 = vsel %vm827, %v838, %v840
    %v842 = vshll.u32 %v802, 8
    %v843 = vmul.u32.u64.compose %v842, %v841
    %v844 = vextract.low.u32 %v843
    %v845 = vextract.high.u32 %v843
    %v846 = vmul.u32.u64.compose %v842, %v837
    %v847 = vextract.low.u32 %v846
    %v848 = vextract.high.u32 %v846
    %v849 = vmul.u32 %v842, %v833
    %v850 = vadd.s32 %v845, %v847
    %vm851 = vc.u32 %v845, %v847
    %v852 = vadd.s32 %v848, 1
    %v853 = vsel %vm851, %v852, %v848
    %v854 = vadd.s32 %v849, %v853
    %v855 = vadd.s32 %v854, 536870912
    %v856 = vshrl.u32 %v855, 30
    %v857 = vshll.u32 %v856, 30
    %v858 = vsub.s32 %v854, %v857
    %vm859 = vcmp.lt.s32.totalorder %v858, 0
    %v860 = vsub.s32 0, %v858
    %v861 = vsel %vm859, %v860, %v858
    %v862 = vclz %v861
    %v863 = vsub.s32 %v862, 2
    %vm864 = vcmp.gt.s32.totalorder 0, %v863
    %v865 = vsel %vm864, 0, %v863
    %v866 = vsub.s32 32, %v865
    %v867 = vshll.u32 %v858, %v865
    %v868 = vshrl.u32 %v850, %v866
    %v869 = vor.u32 %v867, %v868
    %v870 = vsub.s32 4294967266, %v865
    %v871 = vadd.s32 %v870, 127
    %v872 = vshll.u32 %v871, 23
    %v873 = vor.u32 4788187, %v872
    %v874 = vand.u32 2147483647, %v873
    %v876 = vcvt.s32.f32 %v869
    %v877 = vmul.f32 %v876, %v874
    %v878 = vxor.u32 %v877, 2147483648
    %v879 = vsel %vm796, %v878, %v877
    %v880 = vsub.s32 4, %v856
    %v881 = vsel %vm796, %v880, %v856
    %v882 = vsel %vm795, %v159, %v879
    %v883 = vsel %vm795, 0, %v881
    %v884 = vcosq.f32.pop %v882
    %v885 = vsinq.f32.pop %v882
    %vm886 = vweird.f32 %v159
    %v887 = vand.u32 %v883, 3
    %vm888 = vcmp.lt.s32.totalorder %v887, 2
    %vm889 = vcmp.eq.s32.totalorder %v887, 0
    %v890 = vxor.u32 %v885, 2147483648
    %v891 = vsel %vm889, %v884, %v890
    %vm892 = vcmp.eq.s32.totalorder %v887, 2
    %v893 = vxor.u32 %v884, 2147483648
    %v894 = vsel %vm892, %v893, %v885
    %v895 = vsel %vm888, %v891, %v894
    %v896 = vsel %vm886, nan, %v895
    %v897 = vand.u32 2147483647, %v160
    %vm898 = vcmp.le.f32.partialorder %v897, 0.7853982
    %vm899 = vcmp.lt.s32.totalorder %v160, 0
    %v900 = vand.u32 %v160, 2139095040
    %v901 = vshrl.u32 %v900, 23
    %v902 = vsub.s32 %v901, 127
    %v903 = vand.u32 2147483647, %v160
    %v904 = vand.u32 %v903, 8388607
    %v905 = vor.u32 %v904, 8388608
    %v906 = vsub.s32 0, %v905
    %v907 = vadd.s32 %v902, 1
    %vm908 = vcmp.gt.s32.totalorder %v907, 0
    %v909 = vsel %vm908, %v907, 0
    %v910 = vshrl.u32 %v909, 5
    %v911 = vand.u32 %v909, 31
    %v912 = vsub.s32 32, %v911
    %v913 = vshrl.u32 683565275, %v912
    %v914 = vshll.u32 683565275, %v911
    %v915 = vshrl.u32 2475754826, %v912
    %v916 = vor.u32 %v914, %v915
    %v917 = vshll.u32 2475754826, %v911
    %v918 = vshrl.u32 2131351028, %v912
    %v919 = vor.u32 %v917, %v918
    %v920 = vshll.u32 2131351028, %v911
    %v921 = vshrl.u32 2102212464, %v912
    %v922 = vor.u32 %v920, %v921
    %v923 = vshll.u32 2102212464, %v911
    %v924 = vshrl.u32 920167782, %v912
    %v925 = vor.u32 %v923, %v924
    %v926 = vshll.u32 920167782, %v911
    %v927 = vshrl.u32 1326507024, %v912
    %v928 = vor.u32 %v926, %v927
    %vm929 = vcmp.lt.s32.totalorder %v910, 1
    %vm930 = vcmp.lt.s32.totalorder %v910, 2
    %vm931 = vcmp.lt.s32.totalorder %v910, 3
    %vm932 = vcmp.lt.s32.totalorder %v910, 4
    %v933 = vsel %vm929, %v913, %v916
    %v934 = vsel %vm932, %v922, 2102212464
    %v935 = vsel %vm931, %v919, %v934
    %v936 = vsel %vm930, %v933, %v935
    %v937 = vsel %vm929, %v916, %v919
    %v938 = vsel %vm932, %v925, 920167782
    %v939 = vsel %vm931, %v922, %v938
    %v940 = vsel %vm930, %v937, %v939
    %v941 = vsel %vm929, %v919, %v922
    %v942 = vsel %vm932, %v928, 1326507024
    %v943 = vsel %vm931, %v925, %v942
    %v944 = vsel %vm930, %v941, %v943
    %v945 = vshll.u32 %v905, 8
    %v946 = vmul.u32.u64.compose %v945, %v944
    %v947 = vextract.low.u32 %v946
    %v948 = vextract.high.u32 %v946
    %v949 = vmul.u32.u64.compose %v945, %v940
    %v950 = vextract.low.u32 %v949
    %v951 = vextract.high.u32 %v949
    %v952 = vmul.u32 %v945, %v936
    %v953 = vadd.s32 %v948, %v950
    %vm954 = vc.u32 %v948, %v950
    %v955 = vadd.s32 %v951, 1
    %v956 = vsel %vm954, %v955, %v951
    %v957 = vadd.s32 %v952, %v956
    %v958 = vadd.s32 %v957, 536870912
    %v959 = vshrl.u32 %v958, 30
    %v960 = vshll.u32 %v959, 30
    %v961 = vsub.s32 %v957, %v960
    %vm962 = vcmp.lt.s32.totalorder %v961, 0
    %v963 = vsub.s32 0, %v961
    %v964 = vsel %vm962, %v963, %v961
    %v965 = vclz %v964
    %v966 = vsub.s32 %v965, 2
    %vm967 = vcmp.gt.s32.totalorder 0, %v966
    %v968 = vsel %vm967, 0, %v966
    %v969 = vsub.s32 32, %v968
    %v970 = vshll.u32 %v961, %v968
    %v971 = vshrl.u32 %v953, %v969
    %v972 = vor.u32 %v970, %v971
    %v973 = vsub.s32 4294967266, %v968
    %v974 = vadd.s32 %v973, 127
    %v975 = vshll.u32 %v974, 23
    %v976 = vor.u32 4788187, %v975
    %v977 = vand.u32 2147483647, %v976
    %v979 = vcvt.s32.f32 %v972
    %v980 = vmul.f32 %v979, %v977
    %v981 = vxor.u32 %v980, 2147483648
    %v982 = vsel %vm899, %v981, %v980
    %v983 = vsub.s32 4, %v959
    %v984 = vsel %vm899, %v983, %v959
    %v985 = vsel %vm898, %v160, %v982
    %v986 = vsel %vm898, 0, %v984
    %v987 = vcosq.f32.pop %v985
    %v988 = vsinq.f32.pop %v985
    %vm989 = vweird.f32 %v160
    %v990 = vand.u32 %v986, 3
    %vm991 = vcmp.lt.s32.totalorder %v990, 2
    %vm992 = vcmp.eq.s32.totalorder %v990, 0
    %v993 = vxor.u32 %v988, 2147483648
    %v994 = vsel %vm992, %v987, %v993
    %vm995 = vcmp.eq.s32.totalorder %v990, 2
    %v996 = vxor.u32 %v987, 2147483648
    %v997 = vsel %vm995, %v996, %v988
    %v998 = vsel %vm991, %v994, %v997
    %v999 = vsel %vm989, nan, %v998
    %v1000 = vsub.f32 1.0, %v161
    %v1002 = vlaneseq
    %v1003 = vshrl.u32 %v1002, 7
    %v1004 = vsub.s32 0, %v1003
    %v1005 = vrot.slane %v1000, %v1004
    %v1007 = vmul.f32 %v690, %v1005
    %v1008 = vmul.f32 %v793, %v1005
    %v1009 = vmul.f32 %v896, %v1005
    %v1010 = vmul.f32 %v999, %v1005
    %v1011 = vadd.f32 %v584, %v1007
    %v1012 = vadd.f32 %v585, %v1008
    %v1013 = vadd.f32 %v586, %v1009
    %v1014 = vadd.f32 %v587, %v1010
    %1015 = vst [vmem:[#allocation7] sm:$0xff] %v1011
    %1016 = vst [vmem:[#allocation7 + $0x8] sm:$0xff] %v1012
    %1017 = vst [vmem:[#allocation7 + $0x10] sm:$0xff] %v1013
    %1018 = vst [vmem:[#allocation7 + $0x18] sm:$0xff] %v1014
    // Predicated region
    $region22: #{tpu_custom_call.1} parent=1 // pred_check
      _
    $region23: #{tpu_custom_call.1} parent=1 // pred_check_branch
      %1020 = sbr.rel (0) target = $region25
    $region24: #{tpu_custom_call.1} parent=1 // pred_region
      %s1022 = ssub.s32 512, 64
      %1023 = vsyncadd [#allocation4], %s1022
      %s1024 = sshll.u32 [#allocation7], 4
      %s1025 = int_to_ptr.vmem [resolvable:$true] %s1024
      %1030 = dma.vmem_to_hbm [thread:$0]  %s1025, 64, %s3, [#allocation4], 64, 64, 4
    $region25: #{tpu_custom_call.1} parent=1 // pred_fallthru
      _
    // Predicated region
    $region26: #{tpu_custom_call.1} parent=1 // pred_check
      _
    $region27: #{tpu_custom_call.1} parent=1 // pred_check_branch
      %1032 = sbr.rel (0) target = $region29
    $region28: #{tpu_custom_call.1} parent=1 // pred_region
      %1033 = dma.done [#allocation4], 512
    $region29: #{tpu_custom_call.1} parent=1 // pred_fallthru
      _
    %1034 = vsyncpa [#allocation3], 1
    %1035 = vsyncpa [#allocation6], 1
    %1036 = vsyncpa [#allocation4], 1

</llo_original>
